<compile_context>
chip_gen: v7x
topology: tpu7x:2x2x1
jax: 0.10.0
libtpu: 0.0.40
codegen_flags: <defaults>
</compile_context>

<pallas_src>
import numpy as np
import jax
import jax.numpy as jnp
from jax import lax
from jax.experimental import pallas as pl
from jax.experimental.pallas import tpu as pltpu  # noqa: F401  (TPU backend)

# ------------------------- problem sizes (small) -------------------------
B = 2          # batch
T = 16         # num segments (center=7.5 in _generate_proposal assumes 16)
L = 8          # max query length
D = 32         # video feat dim
W2V = 32       # word embedding dim
H = 32         # hidden dim
ANCHOR_WIDTHS = (8, 16)


# ------------------------- static proposal generation --------------------
def _generate_proposal(num_segments, widths):
    """Faithful numpy port of CSMGAN._generate_proposal (static, no kernel needed)."""
    widths = np.array(widths, dtype=np.float64)
    anchor_widths = np.broadcast_to(
        widths[None, :], (num_segments, len(widths))).reshape(-1).astype(np.float32)
    center = 7.5  # NOTE: hardcoded in the source; only consistent with num_segments=16
    start = center - 0.5 * (widths - 1)
    end = center + 0.5 * (widths - 1)
    anchors = np.stack([start, end], -1)
    num_anchors = anchors.shape[0]
    w = anchors[:, 1] - anchors[:, 0] + 1
    centers = np.arange(0, num_segments)
    start = np.expand_dims(centers, 1) - 0.5 * (np.expand_dims(w, 0) - 1)
    end = np.expand_dims(centers, 1) + 0.5 * (np.expand_dims(w, 0) - 1)
    proposals = np.stack([start, end], -1)                       # (T, A, 2)
    proposals_flat = np.reshape(proposals, [-1, 2]).astype(np.float32)  # (T*A, 2)
    illegal = np.logical_or(proposals_flat[:, 0] < 0,
                            proposals_flat[:, 1] >= num_segments)
    scores_mask = (1 - illegal).astype(np.float32)[None, :]      # (1, T*A)
    return proposals_flat, num_anchors, anchor_widths, scores_mask


# ------------------------- fused Pallas kernel ----------------------------
def _csmgan_kernel(feats_ref, segm_ref, qry_ref, wm_ref,
                   wv_ref, bv_ref, wq_ref, bq_ref, wh_ref, bh_ref,
                   msk_ref, prop_ref, out_ref):
    """Fused forward: video enc + query enc + cross-modal fusion + head + decode.

    Single gridless invocation; all operands are whole-array VMEM refs.
      feats (B,T,D)  segm (B,T,1)  qry (B,L,W2V)  wm (B,1,L)
      wv (D,H) bv (1,H)   wq (W2V,H) bq (1,H)   wh (H,3A) bh (1,3A)
      msk (T,3A) = [iou1dmask | 0 | 0]     prop (T,3A) = [0 | prop_s | prop_e]
      out (B,T,3A) packed as [iou | loc_start_norm | loc_end_norm]
    """
    num_seg = feats_ref.shape[1]
    n_head_cols = bh_ref.shape[1]          # 3 * A
    num_a = n_head_cols // 3
    inv_n = 1.0 / float(num_seg)

    # Load weights / static tables once (hoisted out of the batch unroll).
    w_vid = wv_ref[...]
    b_vid = bv_ref[...]
    w_qry = wq_ref[...]
    b_qry = bq_ref[...]
    w_head = wh_ref[...]
    b_head = bh_ref[...]
    msk_pad = msk_ref[...]
    prop_pad = prop_ref[...]

    col = lax.broadcasted_iota(jnp.int32, (num_seg, n_head_cols), 1)
    is_iou_col = col < num_a

    for b in range(feats_ref.shape[0]):     # static unroll; B is tiny
        x = feats_ref[b]                    # (T, D)
        sm = segm_ref[b]                    # (T, 1)
        q = qry_ref[b]                      # (L, W2V)
        wm = wm_ref[b]                      # (1, L)

        # --- video / query encoders (masked linear stand-ins) ---
        seg_h = jnp.tanh(
            jnp.dot(x, w_vid, preferred_element_type=jnp.float32) + b_vid) * sm
        word_h = jnp.tanh(
            jnp.dot(q, w_qry, preferred_element_type=jnp.float32) + b_qry)
        # (padded-word rows of word_h need no explicit zeroing: they receive
        #  exactly-zero attention weight below, so they contribute nothing.)

        # --- cross-modal fusion: masked softmax attention over words ---
        scores = lax.dot_general(seg_h, word_h, (((1,), (1,)), ((), ())),
                                 preferred_element_type=jnp.float32)   # (T, L)
        scores = jnp.where(wm > 0.0, scores, -1e9)
        scores = scores - jnp.max(scores, axis=-1, keepdims=True)
        p = jnp.exp(scores)
        p = p * pl.reciprocal(jnp.sum(p, axis=-1, keepdims=True), approx=True)
        att = jnp.dot(p, word_h, preferred_element_type=jnp.float32)   # (T, H)
        xfeat = seg_h + att                                            # residual fusion

        # --- merged prediction head + proposal decode ---
        head = jnp.dot(xfeat, w_head,
                       preferred_element_type=jnp.float32) + b_head    # (T, 3A)
        iou_branch = jax.nn.sigmoid(head) * msk_pad                    # iou * iou1dmask
        box_branch = jnp.clip((prop_pad + head) * inv_n, 0.0, 1.0)     # decode + clamp
        out_ref[b] = jnp.where(is_iou_col, iou_branch, box_branch)     # (T, 3A)


# ------------------------- CSMGAN forward (eval) --------------------------
@jax.jit
def csmgan_forward(params, feats, segmasks, queries, wordmasks, msk_pad, prop_pad):
    Bb, Tt, _ = feats.shape
    n_head_cols = msk_pad.shape[1]
    A = n_head_cols // 3

    # seglens / querylens (= mask sums); the stand-in encoders consume masks directly.
    _seglens = jnp.sum(segmasks, axis=-1)
    _querylens = jnp.sum(wordmasks, axis=-1)

    seg_m_col = segmasks[:, :, None].astype(jnp.float32)    # (B, T, 1)
    word_m_row = wordmasks[:, None, :].astype(jnp.float32)  # (B, 1, L)

    packed = pl.pallas_call(
        _csmgan_kernel,
        out_shape=jax.ShapeDtypeStruct((Bb, Tt, n_head_cols), jnp.float32),
    )(feats, seg_m_col, queries, word_m_row,
      params["w_vid"], params["b_vid"],
      params["w_qry"], params["b_qry"],
      params["w_head"], params["b_head"],
      msk_pad, prop_pad)

    iou_predict = packed[..., :A].reshape(Bb, Tt * A)                 # (B, seg*A)
    loc_s = packed[..., A:2 * A].reshape(Bb, Tt * A)
    loc_e = packed[..., 2 * A:3 * A].reshape(Bb, Tt * A)
    loc_norm_predict = jnp.stack([loc_s, loc_e], axis=-1)             # (B, seg*A, 2)
    return loc_norm_predict, iou_predict


# ------------------------- parameter init (deterministic) -----------------
def init_params(key):
    ks = jax.random.split(key, 5)
    s = 0.1
    A = len(ANCHOR_WIDTHS)
    w_iou = s * jax.random.normal(ks[2], (H, A), jnp.float32)
    w_off_s = s * jax.random.normal(ks[3], (H, A), jnp.float32)
    w_off_e = s * jax.random.normal(ks[4], (H, A), jnp.float32)
    return {
        "w_vid": s * jax.random.normal(ks[0], (D, H), jnp.float32),
        "b_vid": jnp.zeros((1, H), jnp.float32),
        "w_qry": s * jax.random.normal(ks[1], (W2V, H), jnp.float32),
        "b_qry": jnp.zeros((1, H), jnp.float32),
        # merged head: columns [iou | start offset | end offset]
        "w_head": jnp.concatenate([w_iou, w_off_s, w_off_e], axis=1),   # (H, 3A)
        "b_head": jnp.zeros((1, 3 * A), jnp.float32),
    }


if __name__ == "__main__":
    key = jax.random.PRNGKey(0)
    k_feat, k_qry, k_par = jax.random.split(key, 3)

    feats = jax.random.normal(k_feat, (B, T, D), jnp.float32)
    queries = jax.random.normal(k_qry, (B, L, W2V), jnp.float32)

    segmasks = np.ones((B, T), np.float32)
    segmasks[1, 12:] = 0.0                      # second video padded after 12 segs
    wordmasks = np.ones((B, L), np.float32)
    wordmasks[1, 5:] = 0.0                      # second query padded after 5 words
    segmasks = jnp.asarray(segmasks)
    wordmasks = jnp.asarray(wordmasks)

    proposals_flat_np, num_anchors, anchor_widths_np, iou1dmask_np = \
        _generate_proposal(T, ANCHOR_WIDTHS)
    A = num_anchors
    iou_mask_ta = iou1dmask_np.reshape(T, A).astype(np.float32)
    prop_s_ta = proposals_flat_np[:, 0].reshape(T, A)
    prop_e_ta = proposals_flat_np[:, 1].reshape(T, A)
    # Padded (T, 3A) tables consumed by the fused kernel's lane-index select.
    msk_pad = jnp.asarray(
        np.concatenate([iou_mask_ta, np.zeros((T, 2 * A), np.float32)], axis=1))
    prop_pad = jnp.asarray(
        np.concatenate([np.zeros((T, A), np.float32), prop_s_ta, prop_e_ta], axis=1))

    params = init_params(k_par)

    loc_norm_predict, iou_predict = csmgan_forward(
        params, feats, segmasks, queries, wordmasks, msk_pad, prop_pad)

    jax.block_until_ready((loc_norm_predict, iou_predict))
    assert loc_norm_predict.shape == (B, T * num_anchors, 2)
    assert iou_predict.shape == (B, T * num_anchors)
    assert bool(jnp.all(loc_norm_predict >= 0.0)) and bool(jnp.all(loc_norm_predict <= 1.0))
    assert bool(jnp.all(jnp.isfinite(iou_predict)))
    print("KERNEL_OK")
</pallas_src>

<mosaic_0001>
module attributes {stable_mosaic.version = 11 : i64} {
  func.func @_csmgan_kernel(%arg0: memref<2x16x32xf32, #tpu.memory_space<vmem>>, %arg1: memref<2x16x1xf32, #tpu.memory_space<vmem>>, %arg2: memref<2x8x32xf32, #tpu.memory_space<vmem>>, %arg3: memref<2x1x8xf32, #tpu.memory_space<vmem>>, %arg4: memref<32x32xf32, #tpu.memory_space<vmem>>, %arg5: memref<1x32xf32, #tpu.memory_space<vmem>>, %arg6: memref<32x32xf32, #tpu.memory_space<vmem>>, %arg7: memref<1x32xf32, #tpu.memory_space<vmem>>, %arg8: memref<32x6xf32, #tpu.memory_space<vmem>>, %arg9: memref<1x6xf32, #tpu.memory_space<vmem>>, %arg10: memref<16x6xf32, #tpu.memory_space<vmem>>, %arg11: memref<16x6xf32, #tpu.memory_space<vmem>>, %arg12: memref<2x16x6xf32, #tpu.memory_space<vmem>>) attributes {dimension_semantics = [], scalar_prefetch = 0 : i64, scratch_operands = 0 : i64, tpu.core_type = #tpu.core_type<tc>} {
    %c0 = arith.constant 0 : index
    %c0_0 = arith.constant 0 : index
    %0 = vector.load %arg4[%c0, %c0_0] : memref<32x32xf32, #tpu.memory_space<vmem>>, vector<32x32xf32>
    %c0_1 = arith.constant 0 : index
    %c0_2 = arith.constant 0 : index
    %1 = vector.load %arg5[%c0_1, %c0_2] : memref<1x32xf32, #tpu.memory_space<vmem>>, vector<1x32xf32>
    %c0_3 = arith.constant 0 : index
    %c0_4 = arith.constant 0 : index
    %2 = vector.load %arg6[%c0_3, %c0_4] : memref<32x32xf32, #tpu.memory_space<vmem>>, vector<32x32xf32>
    %c0_5 = arith.constant 0 : index
    %c0_6 = arith.constant 0 : index
    %3 = vector.load %arg7[%c0_5, %c0_6] : memref<1x32xf32, #tpu.memory_space<vmem>>, vector<1x32xf32>
    %c0_7 = arith.constant 0 : index
    %c0_8 = arith.constant 0 : index
    %4 = vector.load %arg8[%c0_7, %c0_8] : memref<32x6xf32, #tpu.memory_space<vmem>>, vector<32x6xf32>
    %c0_9 = arith.constant 0 : index
    %c0_10 = arith.constant 0 : index
    %5 = vector.load %arg9[%c0_9, %c0_10] : memref<1x6xf32, #tpu.memory_space<vmem>>, vector<1x6xf32>
    %c0_11 = arith.constant 0 : index
    %c0_12 = arith.constant 0 : index
    %6 = vector.load %arg10[%c0_11, %c0_12] : memref<16x6xf32, #tpu.memory_space<vmem>>, vector<16x6xf32>
    %c0_13 = arith.constant 0 : index
    %c0_14 = arith.constant 0 : index
    %7 = vector.load %arg11[%c0_13, %c0_14] : memref<16x6xf32, #tpu.memory_space<vmem>>, vector<16x6xf32>
    %8 = tpu.iota {dimensions = array<i32: 1>} : vector<16x6xi32>
    %c2_i32 = arith.constant 2 : i32
    %9 = vector.broadcast %c2_i32 : i32 to vector<16x6xi32>
    %10 = arith.cmpi slt, %8, %9 : vector<16x6xi32>
    %c0_15 = arith.constant 0 : index
    %c0_16 = arith.constant 0 : index
    %c0_17 = arith.constant 0 : index
    %11 = vector.load %arg0[%c0_15, %c0_16, %c0_17] : memref<2x16x32xf32, #tpu.memory_space<vmem>>, vector<1x16x32xf32>
    %12 = vector.shape_cast %11 : vector<1x16x32xf32> to vector<16x32xf32>
    %c0_18 = arith.constant 0 : index
    %c0_19 = arith.constant 0 : index
    %c0_20 = arith.constant 0 : index
    %13 = vector.load %arg1[%c0_18, %c0_19, %c0_20] : memref<2x16x1xf32, #tpu.memory_space<vmem>>, vector<1x16x1xf32>
    %14 = vector.shape_cast %13 : vector<1x16x1xf32> to vector<16x1xf32>
    %c0_21 = arith.constant 0 : index
    %c0_22 = arith.constant 0 : index
    %c0_23 = arith.constant 0 : index
    %15 = vector.load %arg2[%c0_21, %c0_22, %c0_23] : memref<2x8x32xf32, #tpu.memory_space<vmem>>, vector<1x8x32xf32>
    %16 = vector.shape_cast %15 : vector<1x8x32xf32> to vector<8x32xf32>
    %c0_24 = arith.constant 0 : index
    %c0_25 = arith.constant 0 : index
    %c0_26 = arith.constant 0 : index
    %17 = vector.load %arg3[%c0_24, %c0_25, %c0_26] : memref<2x1x8xf32, #tpu.memory_space<vmem>>, vector<1x1x8xf32>
    %18 = vector.shape_cast %17 : vector<1x1x8xf32> to vector<1x8xf32>
    %cst = arith.constant dense<0.000000e+00> : vector<16x32xf32>
    %19 = tpu.matmul %12, %0, %cst {dimension_numbers = #tpu.dot_dimension_numbers<[1], [0], [0], [1], [0, 0, 1, 1], [], []>} : vector<16x32xf32>, vector<32x32xf32>, vector<16x32xf32> -> vector<16x32xf32>
    %20 = vector.broadcast %1 : vector<1x32xf32> to vector<16x32xf32>
    %21 = arith.addf %19, %20 : vector<16x32xf32>
    %22 = math.tanh %21 : vector<16x32xf32>
    %23 = vector.broadcast %14 : vector<16x1xf32> to vector<16x32xf32>
    %24 = arith.mulf %22, %23 : vector<16x32xf32>
    %cst_27 = arith.constant dense<0.000000e+00> : vector<8x32xf32>
    %25 = tpu.matmul %16, %2, %cst_27 {dimension_numbers = #tpu.dot_dimension_numbers<[1], [0], [0], [1], [0, 0, 1, 1], [], []>} : vector<8x32xf32>, vector<32x32xf32>, vector<8x32xf32> -> vector<8x32xf32>
    %26 = vector.broadcast %3 : vector<1x32xf32> to vector<8x32xf32>
    %27 = arith.addf %25, %26 : vector<8x32xf32>
    %28 = math.tanh %27 : vector<8x32xf32>
    %cst_28 = arith.constant dense<0.000000e+00> : vector<16x8xf32>
    %29 = tpu.matmul %24, %28, %cst_28 {dimension_numbers = #tpu.dot_dimension_numbers<[1], [1], [0], [0], [0, 0, 1, 0], [], []>} : vector<16x32xf32>, vector<8x32xf32>, vector<16x8xf32> -> vector<16x8xf32>
    %cst_29 = arith.constant 0.000000e+00 : f32
    %30 = vector.broadcast %cst_29 : f32 to vector<1x8xf32>
    %31 = arith.cmpf ogt, %18, %30 : vector<1x8xf32>
    %cst_30 = arith.constant -1.000000e+09 : f32
    %32 = vector.shape_cast %31 : vector<1x8xi1> to vector<1x8xi1>
    %33 = vector.broadcast %32 : vector<1x8xi1> to vector<16x8xi1>
    %34 = vector.broadcast %cst_30 : f32 to vector<16x8xf32>
    %35 = arith.select %33, %29, %34 : vector<16x8xi1>, vector<16x8xf32>
    %cst_31 = arith.constant dense<0xFF800000> : vector<16xf32>
    %36 = vector.multi_reduction <maximumf>, %35, %cst_31 [1] : vector<16x8xf32> to vector<16xf32>
    %37 = vector.shape_cast %36 : vector<16xf32> to vector<16x1xf32>
    %38 = vector.broadcast %37 : vector<16x1xf32> to vector<16x8xf32>
    %39 = arith.subf %35, %38 : vector<16x8xf32>
    %40 = math.exp %39 : vector<16x8xf32>
    %cst_32 = arith.constant dense<0.000000e+00> : vector<16xf32>
    %41 = vector.multi_reduction <add>, %40, %cst_32 [1] : vector<16x8xf32> to vector<16xf32>
    %42 = vector.shape_cast %41 : vector<16xf32> to vector<16x1xf32>
    %43 = tpu.reciprocal %42 {approx = true} : vector<16x1xf32> -> vector<16x1xf32>
    %44 = vector.broadcast %43 : vector<16x1xf32> to vector<16x8xf32>
    %45 = arith.mulf %40, %44 : vector<16x8xf32>
    %cst_33 = arith.constant dense<0.000000e+00> : vector<16x32xf32>
    %46 = tpu.matmul %45, %28, %cst_33 {dimension_numbers = #tpu.dot_dimension_numbers<[1], [0], [0], [1], [0, 0, 1, 1], [], []>} : vector<16x8xf32>, vector<8x32xf32>, vector<16x32xf32> -> vector<16x32xf32>
    %47 = arith.addf %24, %46 : vector<16x32xf32>
    %cst_34 = arith.constant dense<0.000000e+00> : vector<16x6xf32>
    %48 = tpu.matmul %47, %4, %cst_34 {dimension_numbers = #tpu.dot_dimension_numbers<[1], [0], [0], [1], [0, 0, 1, 1], [], []>} : vector<16x32xf32>, vector<32x6xf32>, vector<16x6xf32> -> vector<16x6xf32>
    %49 = vector.broadcast %5 : vector<1x6xf32> to vector<16x6xf32>
    %50 = arith.addf %48, %49 : vector<16x6xf32>
    %51 = arith.negf %50 : vector<16x6xf32>
    %52 = math.exp %51 : vector<16x6xf32>
    %cst_35 = arith.constant 1.000000e+00 : f32
    %53 = vector.broadcast %cst_35 : f32 to vector<16x6xf32>
    %54 = arith.addf %53, %52 : vector<16x6xf32>
    %55 = arith.divf %53, %54 : vector<16x6xf32>
    %56 = arith.mulf %55, %6 : vector<16x6xf32>
    %57 = arith.addf %7, %50 : vector<16x6xf32>
    %cst_36 = arith.constant 6.250000e-02 : f32
    %58 = vector.broadcast %cst_36 : f32 to vector<16x6xf32>
    %59 = arith.mulf %57, %58 : vector<16x6xf32>
    %cst_37 = arith.constant 0.000000e+00 : f32
    %cst_38 = arith.constant 1.000000e+00 : f32
    %60 = vector.broadcast %cst_37 : f32 to vector<16x6xf32>
    %61 = arith.maximumf %60, %59 : vector<16x6xf32>
    %62 = vector.broadcast %cst_38 : f32 to vector<16x6xf32>
    %63 = arith.minimumf %62, %61 : vector<16x6xf32>
    %64 = arith.select %10, %56, %63 : vector<16x6xi1>, vector<16x6xf32>
    %c0_39 = arith.constant 0 : index
    %c0_40 = arith.constant 0 : index
    %c0_41 = arith.constant 0 : index
    %65 = vector.load %arg12[%c0_39, %c0_40, %c0_41] : memref<2x16x6xf32, #tpu.memory_space<vmem>>, vector<1x16x6xf32>
    %66 = vector.shape_cast %65 : vector<1x16x6xf32> to vector<16x6xf32>
    %67 = vector.shape_cast %64 : vector<16x6xf32> to vector<1x16x6xf32>
    tpu.vector_store %arg12[%c0_39, %c0_40, %c0_41], %67 {strides = array<i32>} : memref<2x16x6xf32, #tpu.memory_space<vmem>>, vector<1x16x6xf32>,
    %c1 = arith.constant 1 : index
    %c0_42 = arith.constant 0 : index
    %c0_43 = arith.constant 0 : index
    %68 = vector.load %arg0[%c1, %c0_42, %c0_43] : memref<2x16x32xf32, #tpu.memory_space<vmem>>, vector<1x16x32xf32>
    %69 = vector.shape_cast %68 : vector<1x16x32xf32> to vector<16x32xf32>
    %c1_44 = arith.constant 1 : index
    %c0_45 = arith.constant 0 : index
    %c0_46 = arith.constant 0 : index
    %70 = vector.load %arg1[%c1_44, %c0_45, %c0_46] : memref<2x16x1xf32, #tpu.memory_space<vmem>>, vector<1x16x1xf32>
    %71 = vector.shape_cast %70 : vector<1x16x1xf32> to vector<16x1xf32>
    %c1_47 = arith.constant 1 : index
    %c0_48 = arith.constant 0 : index
    %c0_49 = arith.constant 0 : index
    %72 = vector.load %arg2[%c1_47, %c0_48, %c0_49] : memref<2x8x32xf32, #tpu.memory_space<vmem>>, vector<1x8x32xf32>
    %73 = vector.shape_cast %72 : vector<1x8x32xf32> to vector<8x32xf32>
    %c1_50 = arith.constant 1 : index
    %c0_51 = arith.constant 0 : index
    %c0_52 = arith.constant 0 : index
    %74 = vector.load %arg3[%c1_50, %c0_51, %c0_52] : memref<2x1x8xf32, #tpu.memory_space<vmem>>, vector<1x1x8xf32>
    %75 = vector.shape_cast %74 : vector<1x1x8xf32> to vector<1x8xf32>
    %cst_53 = arith.constant dense<0.000000e+00> : vector<16x32xf32>
    %76 = tpu.matmul %69, %0, %cst_53 {dimension_numbers = #tpu.dot_dimension_numbers<[1], [0], [0], [1], [0, 0, 1, 1], [], []>} : vector<16x32xf32>, vector<32x32xf32>, vector<16x32xf32> -> vector<16x32xf32>
    %77 = vector.broadcast %1 : vector<1x32xf32> to vector<16x32xf32>
    %78 = arith.addf %76, %77 : vector<16x32xf32>
    %79 = math.tanh %78 : vector<16x32xf32>
    %80 = vector.broadcast %71 : vector<16x1xf32> to vector<16x32xf32>
    %81 = arith.mulf %79, %80 : vector<16x32xf32>
    %cst_54 = arith.constant dense<0.000000e+00> : vector<8x32xf32>
    %82 = tpu.matmul %73, %2, %cst_54 {dimension_numbers = #tpu.dot_dimension_numbers<[1], [0], [0], [1], [0, 0, 1, 1], [], []>} : vector<8x32xf32>, vector<32x32xf32>, vector<8x32xf32> -> vector<8x32xf32>
    %83 = vector.broadcast %3 : vector<1x32xf32> to vector<8x32xf32>
    %84 = arith.addf %82, %83 : vector<8x32xf32>
    %85 = math.tanh %84 : vector<8x32xf32>
    %cst_55 = arith.constant dense<0.000000e+00> : vector<16x8xf32>
    %86 = tpu.matmul %81, %85, %cst_55 {dimension_numbers = #tpu.dot_dimension_numbers<[1], [1], [0], [0], [0, 0, 1, 0], [], []>} : vector<16x32xf32>, vector<8x32xf32>, vector<16x8xf32> -> vector<16x8xf32>
    %cst_56 = arith.constant 0.000000e+00 : f32
    %87 = vector.broadcast %cst_56 : f32 to vector<1x8xf32>
    %88 = arith.cmpf ogt, %75, %87 : vector<1x8xf32>
    %cst_57 = arith.constant -1.000000e+09 : f32
    %89 = vector.shape_cast %88 : vector<1x8xi1> to vector<1x8xi1>
    %90 = vector.broadcast %89 : vector<1x8xi1> to vector<16x8xi1>
    %91 = vector.broadcast %cst_57 : f32 to vector<16x8xf32>
    %92 = arith.select %90, %86, %91 : vector<16x8xi1>, vector<16x8xf32>
    %cst_58 = arith.constant dense<0xFF800000> : vector<16xf32>
    %93 = vector.multi_reduction <maximumf>, %92, %cst_58 [1] : vector<16x8xf32> to vector<16xf32>
    %94 = vector.shape_cast %93 : vector<16xf32> to vector<16x1xf32>
    %95 = vector.broadcast %94 : vector<16x1xf32> to vector<16x8xf32>
    %96 = arith.subf %92, %95 : vector<16x8xf32>
    %97 = math.exp %96 : vector<16x8xf32>
    %cst_59 = arith.constant dense<0.000000e+00> : vector<16xf32>
    %98 = vector.multi_reduction <add>, %97, %cst_59 [1] : vector<16x8xf32> to vector<16xf32>
    %99 = vector.shape_cast %98 : vector<16xf32> to vector<16x1xf32>
    %100 = tpu.reciprocal %99 {approx = true} : vector<16x1xf32> -> vector<16x1xf32>
    %101 = vector.broadcast %100 : vector<16x1xf32> to vector<16x8xf32>
    %102 = arith.mulf %97, %101 : vector<16x8xf32>
    %cst_60 = arith.constant dense<0.000000e+00> : vector<16x32xf32>
    %103 = tpu.matmul %102, %85, %cst_60 {dimension_numbers = #tpu.dot_dimension_numbers<[1], [0], [0], [1], [0, 0, 1, 1], [], []>} : vector<16x8xf32>, vector<8x32xf32>, vector<16x32xf32> -> vector<16x32xf32>
    %104 = arith.addf %81, %103 : vector<16x32xf32>
    %cst_61 = arith.constant dense<0.000000e+00> : vector<16x6xf32>
    %105 = tpu.matmul %104, %4, %cst_61 {dimension_numbers = #tpu.dot_dimension_numbers<[1], [0], [0], [1], [0, 0, 1, 1], [], []>} : vector<16x32xf32>, vector<32x6xf32>, vector<16x6xf32> -> vector<16x6xf32>
    %106 = vector.broadcast %5 : vector<1x6xf32> to vector<16x6xf32>
    %107 = arith.addf %105, %106 : vector<16x6xf32>
    %108 = arith.negf %107 : vector<16x6xf32>
    %109 = math.exp %108 : vector<16x6xf32>
    %cst_62 = arith.constant 1.000000e+00 : f32
    %110 = vector.broadcast %cst_62 : f32 to vector<16x6xf32>
    %111 = arith.addf %110, %109 : vector<16x6xf32>
    %112 = arith.divf %110, %111 : vector<16x6xf32>
    %113 = arith.mulf %112, %6 : vector<16x6xf32>
    %114 = arith.addf %7, %107 : vector<16x6xf32>
    %cst_63 = arith.constant 6.250000e-02 : f32
    %115 = vector.broadcast %cst_63 : f32 to vector<16x6xf32>
    %116 = arith.mulf %114, %115 : vector<16x6xf32>
    %cst_64 = arith.constant 0.000000e+00 : f32
    %cst_65 = arith.constant 1.000000e+00 : f32
    %117 = vector.broadcast %cst_64 : f32 to vector<16x6xf32>
    %118 = arith.maximumf %117, %116 : vector<16x6xf32>
    %119 = vector.broadcast %cst_65 : f32 to vector<16x6xf32>
    %120 = arith.minimumf %119, %118 : vector<16x6xf32>
    %121 = arith.select %10, %113, %120 : vector<16x6xi1>, vector<16x6xf32>
    %c1_66 = arith.constant 1 : index
    %c0_67 = arith.constant 0 : index
    %c0_68 = arith.constant 0 : index
    %122 = vector.load %arg12[%c1_66, %c0_67, %c0_68] : memref<2x16x6xf32, #tpu.memory_space<vmem>>, vector<1x16x6xf32>
    %123 = vector.shape_cast %122 : vector<1x16x6xf32> to vector<16x6xf32>
    %124 = vector.shape_cast %121 : vector<16x6xf32> to vector<1x16x6xf32>
    tpu.vector_store %arg12[%c1_66, %c0_67, %c0_68], %124 {strides = array<i32>} : memref<2x16x6xf32, #tpu.memory_space<vmem>>, vector<1x16x6xf32>,
    return
  }
}

</mosaic_0001>

<llo_original>
// kernel: csmgan_forward.1
$region0: #{csmgan_forward.1}
  #allocation0 [shape = 'u32[]', space=smem, size = 0x4, offset = 0x4, fixed_abs, tag = 'smem constant byte address 0x4 - core index']
  #allocation1 [shape = 'u32[144,128]{1,0:T(1,128)}', space=vmem, size = 0x12000, scoped, tag = 'internal scratch']
  %s0 = inlined_call_operand.vmem [shape: f32[2,16,32], index: 0, kind: input, shape index: {}]
  %s1 = inlined_call_operand.vmem [shape: f32[2,16,1], index: 1, kind: input, shape index: {}]
  %s2 = inlined_call_operand.vmem [shape: f32[2,8,32], index: 2, kind: input, shape index: {}]
  %s3 = inlined_call_operand.vmem [shape: f32[2,1,8], index: 3, kind: input, shape index: {}]
  %s4 = inlined_call_operand.vmem [shape: f32[32,32], index: 4, kind: input, shape index: {}]
  %s5 = inlined_call_operand.hbm [shape: f32[1,32], index: 5, kind: input, shape index: {}]
  %s6 = inlined_call_operand.vmem [shape: f32[32,32], index: 6, kind: input, shape index: {}]
  %s7 = inlined_call_operand.hbm [shape: f32[1,32], index: 7, kind: input, shape index: {}]
  %s8 = inlined_call_operand.vmem [shape: f32[32,6], index: 8, kind: input, shape index: {}]
  %s9 = inlined_call_operand.hbm [shape: f32[1,6], index: 9, kind: input, shape index: {}]
  %s10 = inlined_call_operand.vmem [shape: f32[16,6], index: 10, kind: input, shape index: {}]
  %s11 = inlined_call_operand.vmem [shape: f32[16,6], index: 11, kind: input, shape index: {}]
  %s12 = inlined_call_operand.vmem [shape: f32[2,16,6], index: 12, kind: output, shape index: {}]
  %s13 = sld [smem:[#allocation0]]
  $region70: #{csmgan_forward.1} parent=0
    _
  %s15 = ssub.s32 1, %s13
  %s16 = scalar_select 0, %s15, %s13
  $region1: #{csmgan_forward.1} parent=0
    #allocation2 [shape = 'u8[512]{0}', space=vmem, size = 0x400, scoped, tag = 'input window, operand 5, single buffered']
    #allocation3 [shape = 's32[1]{0}', space=sflag, size = 0x4, scoped, tag = 'scoped memory for csmgan_forward.1']
    #allocation4 [shape = 'u8[512]{0}', space=vmem, size = 0x400, scoped, tag = 'input window, operand 7, single buffered']
    #allocation5 [shape = 's32[1]{0}', space=sflag, size = 0x4, scoped, tag = 'scoped memory for csmgan_forward.1']
    #allocation6 [shape = 'u8[512]{0}', space=vmem, size = 0x400, scoped, tag = 'input window, operand 9, single buffered']
    %17 = vsyncpa [#allocation3], 0
    %18 = vsyncpa [#allocation5], 0
    // Predicated region
    $region2: #{csmgan_forward.1} parent=1 // pred_check
      _
    $region3: #{csmgan_forward.1} parent=1 // pred_check_branch
      %20 = sbr.rel (0) target = $region5
    $region4: #{csmgan_forward.1} parent=1 // pred_region
      _
    $region5: #{csmgan_forward.1} parent=1 // pred_fallthru
      _
    // Predicated region
    $region6: #{csmgan_forward.1} parent=1 // pred_check
      _
    $region7: #{csmgan_forward.1} parent=1 // pred_check_branch
      %22 = sbr.rel (0) target = $region9
    $region8: #{csmgan_forward.1} parent=1 // pred_region
      _
    $region9: #{csmgan_forward.1} parent=1 // pred_fallthru
      _
    // Predicated region
    $region10: #{csmgan_forward.1} parent=1 // pred_check
      _
    $region11: #{csmgan_forward.1} parent=1 // pred_check_branch
      %24 = sbr.rel (0) target = $region13
    $region12: #{csmgan_forward.1} parent=1 // pred_region
      _
    $region13: #{csmgan_forward.1} parent=1 // pred_fallthru
      _
    // Predicated region
    $region14: #{csmgan_forward.1} parent=1 // pred_check
      _
    $region15: #{csmgan_forward.1} parent=1 // pred_check_branch
      %26 = sbr.rel (0) target = $region17
    $region16: #{csmgan_forward.1} parent=1 // pred_region
      _
    $region17: #{csmgan_forward.1} parent=1 // pred_fallthru
      _
    // Predicated region
    $region18: #{csmgan_forward.1} parent=1 // pred_check
      _
    $region19: #{csmgan_forward.1} parent=1 // pred_check_branch
      %28 = sbr.rel (0) target = $region21
    $region20: #{csmgan_forward.1} parent=1 // pred_region
      _
    $region21: #{csmgan_forward.1} parent=1 // pred_fallthru
      _
    // Predicated region
    $region22: #{csmgan_forward.1} parent=1 // pred_check
      _
    $region23: #{csmgan_forward.1} parent=1 // pred_check_branch
      %30 = sbr.rel (0) target = $region25
    $region24: #{csmgan_forward.1} parent=1 // pred_region
      %s32 = ssub.s32 16, 16
      %33 = vsyncadd [#allocation3], %s32
      %s35 = sshll.u32 [#allocation2], 4
      %s36 = int_to_ptr.vmem [resolvable:$true] %s35
      %38 = dma.hbm_to_vmem [thread:$0]  %s5, 16, %s36, [#allocation3]
    $region25: #{csmgan_forward.1} parent=1 // pred_fallthru
      _
    // Predicated region
    $region26: #{csmgan_forward.1} parent=1 // pred_check
      _
    $region27: #{csmgan_forward.1} parent=1 // pred_check_branch
      %40 = sbr.rel (0) target = $region29
    $region28: #{csmgan_forward.1} parent=1 // pred_region
      _
    $region29: #{csmgan_forward.1} parent=1 // pred_fallthru
      _
    // Predicated region
    $region30: #{csmgan_forward.1} parent=1 // pred_check
      _
    $region31: #{csmgan_forward.1} parent=1 // pred_check_branch
      %42 = sbr.rel (0) target = $region33
    $region32: #{csmgan_forward.1} parent=1 // pred_region
      %s44 = ssub.s32 16, 16
      %45 = vsyncadd [#allocation5], %s44
      %s47 = sshll.u32 [#allocation4], 4
      %s48 = int_to_ptr.vmem [resolvable:$true] %s47
      %50 = dma.hbm_to_vmem [thread:$0]  %s7, 16, %s48, [#allocation5]
    $region33: #{csmgan_forward.1} parent=1 // pred_fallthru
      _
    // Predicated region
    $region34: #{csmgan_forward.1} parent=1 // pred_check
      _
    $region35: #{csmgan_forward.1} parent=1 // pred_check_branch
      %52 = sbr.rel (0) target = $region37
    $region36: #{csmgan_forward.1} parent=1 // pred_region
      _
    $region37: #{csmgan_forward.1} parent=1 // pred_fallthru
      _
    // Predicated region
    $region38: #{csmgan_forward.1} parent=1 // pred_check
      _
    $region39: #{csmgan_forward.1} parent=1 // pred_check_branch
      %54 = sbr.rel (0) target = $region41
    $region40: #{csmgan_forward.1} parent=1 // pred_region
      %s56 = ssub.s32 16, 16
      %57 = vsyncadd [#allocation5], %s56
      %s59 = sshll.u32 [#allocation6], 4
      %s60 = int_to_ptr.vmem [resolvable:$true] %s59
      %62 = dma.hbm_to_vmem [thread:$0]  %s9, 16, %s60, [#allocation5]
    $region41: #{csmgan_forward.1} parent=1 // pred_fallthru
      _
    // Predicated region
    $region42: #{csmgan_forward.1} parent=1 // pred_check
      _
    $region43: #{csmgan_forward.1} parent=1 // pred_check_branch
      %64 = sbr.rel (0) target = $region45
    $region44: #{csmgan_forward.1} parent=1 // pred_region
      _
    $region45: #{csmgan_forward.1} parent=1 // pred_fallthru
      _
    // Predicated region
    $region46: #{csmgan_forward.1} parent=1 // pred_check
      _
    $region47: #{csmgan_forward.1} parent=1 // pred_check_branch
      %66 = sbr.rel (0) target = $region49
    $region48: #{csmgan_forward.1} parent=1 // pred_region
      _
    $region49: #{csmgan_forward.1} parent=1 // pred_fallthru
      _
    // Predicated region
    $region50: #{csmgan_forward.1} parent=1 // pred_check
      _
    $region51: #{csmgan_forward.1} parent=1 // pred_check_branch
      %68 = sbr.rel (0) target = $region53
    $region52: #{csmgan_forward.1} parent=1 // pred_region
      %69 = dma.done [#allocation3], 16
    $region53: #{csmgan_forward.1} parent=1 // pred_fallthru
      _
    // Predicated region
    $region54: #{csmgan_forward.1} parent=1 // pred_check
      _
    $region55: #{csmgan_forward.1} parent=1 // pred_check_branch
      %71 = sbr.rel (0) target = $region57
    $region56: #{csmgan_forward.1} parent=1 // pred_region
      %72 = dma.done [#allocation5], 16
    $region57: #{csmgan_forward.1} parent=1 // pred_fallthru
      _
    // Predicated region
    $region58: #{csmgan_forward.1} parent=1 // pred_check
      _
    $region59: #{csmgan_forward.1} parent=1 // pred_check_branch
      %74 = sbr.rel (0) target = $region61
    $region60: #{csmgan_forward.1} parent=1 // pred_region
      %75 = dma.done [#allocation5], 16
    $region61: #{csmgan_forward.1} parent=1 // pred_fallthru
      _
    %v76 = vld [vmem:[%s4] sm:$0xff]
    %v77 = vld [vmem:[%s4 + $0x8] sm:$0xff]
    %v78 = vld [vmem:[%s4 + $0x10] sm:$0xff]
    %v79 = vld [vmem:[%s4 + $0x18] sm:$0xff]
    %v80 = vld [vmem:[#allocation2] sm:$0x1]
    %v81 = vld [vmem:[%s6] sm:$0xff]
    %v82 = vld [vmem:[%s6 + $0x8] sm:$0xff]
    %v83 = vld [vmem:[%s6 + $0x10] sm:$0xff]
    %v84 = vld [vmem:[%s6 + $0x18] sm:$0xff]
    %v85 = vld [vmem:[#allocation4] sm:$0x1]
    %v86 = vld [vmem:[%s8] sm:$0xff]
    %v87 = vld [vmem:[%s8 + $0x8] sm:$0xff]
    %v88 = vld [vmem:[%s8 + $0x10] sm:$0xff]
    %v89 = vld [vmem:[%s8 + $0x18] sm:$0xff]
    %v90 = vld [vmem:[#allocation6] sm:$0x1]
    %v91 = vld [vmem:[%s10] sm:$0xff]
    %v92 = vld [vmem:[%s10 + $0x8] sm:$0xff]
    %v93 = vld [vmem:[%s11] sm:$0xff]
    %v94 = vld [vmem:[%s11 + $0x8] sm:$0xff]
    %v95 = vlaneseq
    %v96 = vand.u32 %v95, 127
    %vm97 = vcmp.lt.s32.totalorder %v96, 2
    %v98 = vld [vmem:[%s0] sm:$0xff]
    %v99 = vld [vmem:[%s0 + $0x8] sm:$0xff]
    %v100 = vld [vmem:[%s1] sm:$0xff]
    %v101 = vld [vmem:[%s1 + $0x8] sm:$0xff]
    %v102 = vld [vmem:[%s2] sm:$0xff]
    %v103 = vld [vmem:[%s3] sm:$0x1]
    %v105 = vlaneseq
    %v106 = vshrl.u32 %v105, 7
    %v107 = vsub.s32 0, %v106
    %v108 = vrot.slane %v80, %v107
    %vm110 = vcmask 261120
    %v112 = vsel %vm110, %v98, 0
    %v115 = vsel %vm110, %v99, 0
    %117 = vmatprep.subr.mxu0 0.0
    %118 = vmatpush1.msra.mxu0 %v76
    %119 = vmatprep.subr.mxu0 0.0
    %120 = vmatpush1.msra.mxu0 %v77
    %121 = vmatprep.subr.mxu0 0.0
    %122 = vmatpush1.msra.mxu0 %v78
    %123 = vmatprep.subr.mxu0 0.0
    %124 = vmatpush1.msra.mxu0 %v79
    %125 = vmatprep.subr.mxu0 0.0
    %126 = vmatpush1.msra.mxu0 0.0
    %127 = vmatprep.subr.mxu0 0.0
    %128 = vmatpush1.msra.mxu0 0.0
    %129 = vmatprep.subr.mxu0 0.0
    %130 = vmatpush1.msra.mxu0 0.0
    %131 = vmatprep.subr.mxu0 0.0
    %132 = vmatpush1.msra.mxu0 0.0
    %133 = vmatprep.subr.mxu0 0.0
    %134 = vmatpush1.msra.mxu0 0.0
    %135 = vmatprep.subr.mxu0 0.0
    %136 = vmatpush1.msra.mxu0 0.0
    %137 = vmatprep.subr.mxu0 0.0
    %138 = vmatpush1.msra.mxu0 0.0
    %139 = vmatprep.subr.mxu0 0.0
    %140 = vmatpush1.msra.mxu0 0.0
    %141 = vmatprep.subr.mxu0 0.0
    %142 = vmatpush1.msra.mxu0 0.0
    %143 = vmatprep.subr.mxu0 0.0
    %144 = vmatpush1.msra.mxu0 0.0
    %145 = vmatprep.subr.mxu0 0.0
    %146 = vmatpush1.msra.mxu0 0.0
    %147 = vmatprep.subr.mxu0 0.0
    %148 = vmatpush1.msra.mxu0 0.0
    %149 = vmatprep.subr.mxu0 0.0
    %150 = vmatpush1.msra.mxu0 0.0
    %151 = vmatprep.subr.mxu0 0.0
    %152 = vmatpush1.msra.mxu0 0.0
    %153 = vmatprep.subr.mxu0 0.0
    %154 = vmatpush1.msra.mxu0 0.0
    %155 = vmatprep.subr.mxu0 0.0
    %156 = vmatpush1.msra.mxu0 0.0
    %157 = vmatprep.subr.mxu0 0.0
    %158 = vmatpush1.msra.mxu0 0.0
    %159 = vmatprep.subr.mxu0 0.0
    %160 = vmatpush1.msra.mxu0 0.0
    %161 = vmatprep.subr.mxu0 0.0
    %162 = vmatpush1.msra.mxu0 0.0
    %163 = vmatprep.subr.mxu0 0.0
    %164 = vmatpush1.msra.mxu0 0.0
    %165 = vmatprep.subr.mxu0 0.0
    %166 = vmatpush1.msra.mxu0 0.0
    %167 = vmatprep.subr.mxu0 0.0
    %168 = vmatpush1.msra.mxu0 0.0
    %169 = vmatprep.subr.mxu0 0.0
    %170 = vmatpush1.msra.mxu0 0.0
    %171 = vmatprep.subr.mxu0 0.0
    %172 = vmatpush1.msra.mxu0 0.0
    %173 = vmatprep.subr.mxu0 0.0
    %174 = vmatpush1.msra.mxu0 0.0
    %175 = vmatprep.subr.mxu0 0.0
    %176 = vmatpush1.msra.mxu0 0.0
    %177 = vmatprep.subr.mxu0 0.0
    %178 = vmatpush1.msra.mxu0 0.0
    %179 = vmatprep.subr.mxu0 0.0
    %180 = vmatpush1.msra.mxu0 0.0
    %181 = vmatprep.mubr.f32.mxu0 0.0
    %182 = vmatmul.mubr.f32.gmra.mrb[0].mxu0 %v112
    %v183 = vpop.f32.mrb[0].mxu0
    %v184 = vadd.f32 %v108, %v183
    %v185 = vpop.f32.mrb[0].mxu0
    %186 = vmatprep.mubr.f32.mxu0 0.0
    %187 = vmatmul.mubr.f32.gmra.mrb[0].mxu0 %v115
    %v188 = vpop.f32.mrb[0].mxu0
    %v189 = vadd.f32 %v108, %v188
    %v190 = vpop.f32.mrb[0].mxu0
    %191 = vdwg.mxu0
    %v192 = vtanh.pop %v184
    %v193 = vtanh.pop %v189
    %195 = vset.pattern.permute.xlu0 0
    %196 = vperm.xlu0 %195, %v100
    %v197 = vpop.permute.xlu0 %196
    %200 = vset.pattern.permute.xlu0 0
    %201 = vperm.xlu0 %200, %v101
    %v202 = vpop.permute.xlu0 %201
    %v204 = vmul.f32 %v192, %v197
    %v205 = vmul.f32 %v193, %v202
    %v207 = vlaneseq
    %v208 = vshrl.u32 %v207, 7
    %v209 = vsub.s32 0, %v208
    %v210 = vrot.slane %v85, %v209
    %v213 = vsel %vm110, %v102, 0
    %215 = vmatprep.subr.mxu0 0.0
    %216 = vmatpush1.msra.mxu0 %v81
    %217 = vmatprep.subr.mxu0 0.0
    %218 = vmatpush1.msra.mxu0 %v82
    %219 = vmatprep.subr.mxu0 0.0
    %220 = vmatpush1.msra.mxu0 %v83
    %221 = vmatprep.subr.mxu0 0.0
    %222 = vmatpush1.msra.mxu0 %v84
    %223 = vmatprep.subr.mxu0 0.0
    %224 = vmatpush1.msra.mxu0 0.0
    %225 = vmatprep.subr.mxu0 0.0
    %226 = vmatpush1.msra.mxu0 0.0
    %227 = vmatprep.subr.mxu0 0.0
    %228 = vmatpush1.msra.mxu0 0.0
    %229 = vmatprep.subr.mxu0 0.0
    %230 = vmatpush1.msra.mxu0 0.0
    %231 = vmatprep.subr.mxu0 0.0
    %232 = vmatpush1.msra.mxu0 0.0
    %233 = vmatprep.subr.mxu0 0.0
    %234 = vmatpush1.msra.mxu0 0.0
    %235 = vmatprep.subr.mxu0 0.0
    %236 = vmatpush1.msra.mxu0 0.0
    %237 = vmatprep.subr.mxu0 0.0
    %238 = vmatpush1.msra.mxu0 0.0
    %239 = vmatprep.subr.mxu0 0.0
    %240 = vmatpush1.msra.mxu0 0.0
    %241 = vmatprep.subr.mxu0 0.0
    %242 = vmatpush1.msra.mxu0 0.0
    %243 = vmatprep.subr.mxu0 0.0
    %244 = vmatpush1.msra.mxu0 0.0
    %245 = vmatprep.subr.mxu0 0.0
    %246 = vmatpush1.msra.mxu0 0.0
    %247 = vmatprep.subr.mxu0 0.0
    %248 = vmatpush1.msra.mxu0 0.0
    %249 = vmatprep.subr.mxu0 0.0
    %250 = vmatpush1.msra.mxu0 0.0
    %251 = vmatprep.subr.mxu0 0.0
    %252 = vmatpush1.msra.mxu0 0.0
    %253 = vmatprep.subr.mxu0 0.0
    %254 = vmatpush1.msra.mxu0 0.0
    %255 = vmatprep.subr.mxu0 0.0
    %256 = vmatpush1.msra.mxu0 0.0
    %257 = vmatprep.subr.mxu0 0.0
    %258 = vmatpush1.msra.mxu0 0.0
    %259 = vmatprep.subr.mxu0 0.0
    %260 = vmatpush1.msra.mxu0 0.0
    %261 = vmatprep.subr.mxu0 0.0
    %262 = vmatpush1.msra.mxu0 0.0
    %263 = vmatprep.subr.mxu0 0.0
    %264 = vmatpush1.msra.mxu0 0.0
    %265 = vmatprep.subr.mxu0 0.0
    %266 = vmatpush1.msra.mxu0 0.0
    %267 = vmatprep.subr.mxu0 0.0
    %268 = vmatpush1.msra.mxu0 0.0
    %269 = vmatprep.subr.mxu0 0.0
    %270 = vmatpush1.msra.mxu0 0.0
    %271 = vmatprep.subr.mxu0 0.0
    %272 = vmatpush1.msra.mxu0 0.0
    %273 = vmatprep.subr.mxu0 0.0
    %274 = vmatpush1.msra.mxu0 0.0
    %275 = vmatprep.subr.mxu0 0.0
    %276 = vmatpush1.msra.mxu0 0.0
    %277 = vmatprep.subr.mxu0 0.0
    %278 = vmatpush1.msra.mxu0 0.0
    %279 = vmatprep.mubr.f32.mxu0 0.0
    %280 = vmatmul.mubr.f32.gmra.mrb[0].mxu0 %v213
    %v281 = vpop.f32.mrb[0].mxu0
    %v282 = vadd.f32 %v210, %v281
    %v283 = vpop.f32.mrb[0].mxu0
    %284 = vdwg.mxu0
    %v285 = vtanh.pop %v282
    %v287 = vsel %vm110, %v204, 0
    %v290 = vsel %vm110, %v205, 0
    %v293 = vsel %vm110, %v285, 0
    %295 = vmatprep.subr.mxu0 0.0
    %296 = vmatpush1.xpose.msra.mxu0 %v293
    %297 = vmatprep.subr.mxu0 0.0
    %298 = vmatpush1.xpose.msra.mxu0 0.0
    %299 = vmatprep.subr.mxu0 0.0
    %300 = vmatpush1.xpose.msra.mxu0 0.0
    %301 = vmatprep.subr.mxu0 0.0
    %302 = vmatpush1.xpose.msra.mxu0 0.0
    %303 = vmatprep.subr.mxu0 0.0
    %304 = vmatpush1.xpose.msra.mxu0 0.0
    %305 = vmatprep.subr.mxu0 0.0
    %306 = vmatpush1.xpose.msra.mxu0 0.0
    %307 = vmatprep.subr.mxu0 0.0
    %308 = vmatpush1.xpose.msra.mxu0 0.0
    %309 = vmatprep.subr.mxu0 0.0
    %310 = vmatpush1.xpose.msra.mxu0 0.0
    %311 = vmatprep.subr.mxu0 0.0
    %312 = vmatpush1.xpose.msra.mxu0 0.0
    %313 = vmatprep.subr.mxu0 0.0
    %314 = vmatpush1.xpose.msra.mxu0 0.0
    %315 = vmatprep.subr.mxu0 0.0
    %316 = vmatpush1.xpose.msra.mxu0 0.0
    %317 = vmatprep.subr.mxu0 0.0
    %318 = vmatpush1.xpose.msra.mxu0 0.0
    %319 = vmatprep.subr.mxu0 0.0
    %320 = vmatpush1.xpose.msra.mxu0 0.0
    %321 = vmatprep.subr.mxu0 0.0
    %322 = vmatpush1.xpose.msra.mxu0 0.0
    %323 = vmatprep.subr.mxu0 0.0
    %324 = vmatpush1.xpose.msra.mxu0 0.0
    %325 = vmatprep.subr.mxu0 0.0
    %326 = vmatpush1.xpose.msra.mxu0 0.0
    %327 = vmatprep.subr.mxu0 0.0
    %328 = vmatpush1.xpose.msra.mxu0 0.0
    %329 = vmatprep.subr.mxu0 0.0
    %330 = vmatpush1.xpose.msra.mxu0 0.0
    %331 = vmatprep.subr.mxu0 0.0
    %332 = vmatpush1.xpose.msra.mxu0 0.0
    %333 = vmatprep.subr.mxu0 0.0
    %334 = vmatpush1.xpose.msra.mxu0 0.0
    %335 = vmatprep.subr.mxu0 0.0
    %336 = vmatpush1.xpose.msra.mxu0 0.0
    %337 = vmatprep.subr.mxu0 0.0
    %338 = vmatpush1.xpose.msra.mxu0 0.0
    %339 = vmatprep.subr.mxu0 0.0
    %340 = vmatpush1.xpose.msra.mxu0 0.0
    %341 = vmatprep.subr.mxu0 0.0
    %342 = vmatpush1.xpose.msra.mxu0 0.0
    %343 = vmatprep.subr.mxu0 0.0
    %344 = vmatpush1.xpose.msra.mxu0 0.0
    %345 = vmatprep.subr.mxu0 0.0
    %346 = vmatpush1.xpose.msra.mxu0 0.0
    %347 = vmatprep.subr.mxu0 0.0
    %348 = vmatpush1.xpose.msra.mxu0 0.0
    %349 = vmatprep.subr.mxu0 0.0
    %350 = vmatpush1.xpose.msra.mxu0 0.0
    %351 = vmatprep.subr.mxu0 0.0
    %352 = vmatpush1.xpose.msra.mxu0 0.0
    %353 = vmatprep.subr.mxu0 0.0
    %354 = vmatpush1.xpose.msra.mxu0 0.0
    %355 = vmatprep.subr.mxu0 0.0
    %356 = vmatpush1.xpose.msra.mxu0 0.0
    %357 = vmatprep.subr.mxu0 0.0
    %358 = vmatpush1.xpose.msra.mxu0 0.0
    %359 = vmatprep.mubr.f32.mxu0 0.0
    %360 = vmatmul.mubr.f32.gmra.mrb[0].mxu0 %v287
    %v361 = vpop.f32.mrb[0].mxu0
    %v362 = vadd.f32 0.0, %v361
    %v363 = vpop.f32.mrb[0].mxu0
    %364 = vmatprep.mubr.f32.mxu0 0.0
    %365 = vmatmul.mubr.f32.gmra.mrb[0].mxu0 %v290
    %v366 = vpop.f32.mrb[0].mxu0
    %v367 = vadd.f32 0.0, %v366
    %v368 = vpop.f32.mrb[0].mxu0
    %369 = vdwg.mxu0
    %vm370 = vcmp.gt.f32.partialorder %v103, 0.0
    %v371 = vsel %vm370, 1, 0
    %v372 = vlaneseq
    %v373 = vshrl.u32 %v372, 7
    %v374 = vsub.s32 0, %v373
    %v375 = vrot.slane %v371, %v374
    %vm376 = vcmp.eq.s32.totalorder %v375, 1
    %v377 = vsel %vm376, %v362, -1e+09
    %v378 = vsel %vm376, %v367, -1e+09
    %vm379 = vcmask 64512
    %v380 = vsel %vm379, %v377, -inf
    %381 = vmax.xlane.f32.xlu0 %v380
    %v382 = vpop.xlane.xlu0 %381
    %v383 = vsel %vm379, %v378, -inf
    %384 = vmax.xlane.f32.xlu0 %v383
    %v385 = vpop.xlane.xlu0 %384
    %v386 = vsub.f32 %v377, %v382
    %v387 = vsub.f32 %v378, %v385
    %v388 = vmul.f32 %v386, 1.442695
    %v389 = vpow.pop %v388
    %v390 = vmul.f32 %v387, 1.442695
    %v391 = vpow.pop %v390
    %v392 = vsel %vm379, %v389, 0.0
    %393 = vadd.xlane.f32.xlu0 %v392
    %v394 = vpop.xlane.xlu0 %393
    %v395 = vsel %vm379, %v391, 0.0
    %396 = vadd.xlane.f32.xlu0 %v395
    %v397 = vpop.xlane.xlu0 %396
    %v398 = vrcp.pop %v394
    %v399 = vrcp.pop %v397
    %v400 = vmul.f32 %v389, %v398
    %v401 = vmul.f32 %v391, %v399
    %v403 = vsel %vm379, %v400, 0
    %v406 = vsel %vm379, %v401, 0
    %408 = vmatprep.subr.mxu0 0.0
    %409 = vmatpush1.msra.mxu0 %v285
    %410 = vmatprep.subr.mxu0 0.0
    %411 = vmatpush1.msra.mxu0 0.0
    %412 = vmatprep.subr.mxu0 0.0
    %413 = vmatpush1.msra.mxu0 0.0
    %414 = vmatprep.subr.mxu0 0.0
    %415 = vmatpush1.msra.mxu0 0.0
    %416 = vmatprep.subr.mxu0 0.0
    %417 = vmatpush1.msra.mxu0 0.0
    %418 = vmatprep.subr.mxu0 0.0
    %419 = vmatpush1.msra.mxu0 0.0
    %420 = vmatprep.subr.mxu0 0.0
    %421 = vmatpush1.msra.mxu0 0.0
    %422 = vmatprep.subr.mxu0 0.0
    %423 = vmatpush1.msra.mxu0 0.0
    %424 = vmatprep.subr.mxu0 0.0
    %425 = vmatpush1.msra.mxu0 0.0
    %426 = vmatprep.subr.mxu0 0.0
    %427 = vmatpush1.msra.mxu0 0.0
    %428 = vmatprep.subr.mxu0 0.0
    %429 = vmatpush1.msra.mxu0 0.0
    %430 = vmatprep.subr.mxu0 0.0
    %431 = vmatpush1.msra.mxu0 0.0
    %432 = vmatprep.subr.mxu0 0.0
    %433 = vmatpush1.msra.mxu0 0.0
    %434 = vmatprep.subr.mxu0 0.0
    %435 = vmatpush1.msra.mxu0 0.0
    %436 = vmatprep.subr.mxu0 0.0
    %437 = vmatpush1.msra.mxu0 0.0
    %438 = vmatprep.subr.mxu0 0.0
    %439 = vmatpush1.msra.mxu0 0.0
    %440 = vmatprep.subr.mxu0 0.0
    %441 = vmatpush1.msra.mxu0 0.0
    %442 = vmatprep.subr.mxu0 0.0
    %443 = vmatpush1.msra.mxu0 0.0
    %444 = vmatprep.subr.mxu0 0.0
    %445 = vmatpush1.msra.mxu0 0.0
    %446 = vmatprep.subr.mxu0 0.0
    %447 = vmatpush1.msra.mxu0 0.0
    %448 = vmatprep.subr.mxu0 0.0
    %449 = vmatpush1.msra.mxu0 0.0
    %450 = vmatprep.subr.mxu0 0.0
    %451 = vmatpush1.msra.mxu0 0.0
    %452 = vmatprep.subr.mxu0 0.0
    %453 = vmatpush1.msra.mxu0 0.0
    %454 = vmatprep.subr.mxu0 0.0
    %455 = vmatpush1.msra.mxu0 0.0
    %456 = vmatprep.subr.mxu0 0.0
    %457 = vmatpush1.msra.mxu0 0.0
    %458 = vmatprep.subr.mxu0 0.0
    %459 = vmatpush1.msra.mxu0 0.0
    %460 = vmatprep.subr.mxu0 0.0
    %461 = vmatpush1.msra.mxu0 0.0
    %462 = vmatprep.subr.mxu0 0.0
    %463 = vmatpush1.msra.mxu0 0.0
    %464 = vmatprep.subr.mxu0 0.0
    %465 = vmatpush1.msra.mxu0 0.0
    %466 = vmatprep.subr.mxu0 0.0
    %467 = vmatpush1.msra.mxu0 0.0
    %468 = vmatprep.subr.mxu0 0.0
    %469 = vmatpush1.msra.mxu0 0.0
    %470 = vmatprep.subr.mxu0 0.0
    %471 = vmatpush1.msra.mxu0 0.0
    %472 = vmatprep.mubr.f32.mxu0 0.0
    %473 = vmatmul.mubr.f32.gmra.mrb[0].mxu0 %v403
    %v474 = vpop.f32.mrb[0].mxu0
    %v475 = vadd.f32 0.0, %v474
    %v476 = vpop.f32.mrb[0].mxu0
    %477 = vmatprep.mubr.f32.mxu0 0.0
    %478 = vmatmul.mubr.f32.gmra.mrb[0].mxu0 %v406
    %v479 = vpop.f32.mrb[0].mxu0
    %v480 = vadd.f32 0.0, %v479
    %v481 = vpop.f32.mrb[0].mxu0
    %482 = vdwg.mxu0
    %v483 = vadd.f32 %v204, %v475
    %v484 = vadd.f32 %v205, %v480
    %v486 = vlaneseq
    %v487 = vshrl.u32 %v486, 7
    %v488 = vsub.s32 0, %v487
    %v489 = vrot.slane %v90, %v488
    %v492 = vsel %vm110, %v483, 0
    %v495 = vsel %vm110, %v484, 0
    %497 = vmatprep.subr.mxu0 0.0
    %498 = vmatpush1.msra.mxu0 %v86
    %499 = vmatprep.subr.mxu0 0.0
    %500 = vmatpush1.msra.mxu0 %v87
    %501 = vmatprep.subr.mxu0 0.0
    %502 = vmatpush1.msra.mxu0 %v88
    %503 = vmatprep.subr.mxu0 0.0
    %504 = vmatpush1.msra.mxu0 %v89
    %505 = vmatprep.subr.mxu0 0.0
    %506 = vmatpush1.msra.mxu0 0.0
    %507 = vmatprep.subr.mxu0 0.0
    %508 = vmatpush1.msra.mxu0 0.0
    %509 = vmatprep.subr.mxu0 0.0
    %510 = vmatpush1.msra.mxu0 0.0
    %511 = vmatprep.subr.mxu0 0.0
    %512 = vmatpush1.msra.mxu0 0.0
    %513 = vmatprep.subr.mxu0 0.0
    %514 = vmatpush1.msra.mxu0 0.0
    %515 = vmatprep.subr.mxu0 0.0
    %516 = vmatpush1.msra.mxu0 0.0
    %517 = vmatprep.subr.mxu0 0.0
    %518 = vmatpush1.msra.mxu0 0.0
    %519 = vmatprep.subr.mxu0 0.0
    %520 = vmatpush1.msra.mxu0 0.0
    %521 = vmatprep.subr.mxu0 0.0
    %522 = vmatpush1.msra.mxu0 0.0
    %523 = vmatprep.subr.mxu0 0.0
    %524 = vmatpush1.msra.mxu0 0.0
    %525 = vmatprep.subr.mxu0 0.0
    %526 = vmatpush1.msra.mxu0 0.0
    %527 = vmatprep.subr.mxu0 0.0
    %528 = vmatpush1.msra.mxu0 0.0
    %529 = vmatprep.subr.mxu0 0.0
    %530 = vmatpush1.msra.mxu0 0.0
    %531 = vmatprep.subr.mxu0 0.0
    %532 = vmatpush1.msra.mxu0 0.0
    %533 = vmatprep.subr.mxu0 0.0
    %534 = vmatpush1.msra.mxu0 0.0
    %535 = vmatprep.subr.mxu0 0.0
    %536 = vmatpush1.msra.mxu0 0.0
    %537 = vmatprep.subr.mxu0 0.0
    %538 = vmatpush1.msra.mxu0 0.0
    %539 = vmatprep.subr.mxu0 0.0
    %540 = vmatpush1.msra.mxu0 0.0
    %541 = vmatprep.subr.mxu0 0.0
    %542 = vmatpush1.msra.mxu0 0.0
    %543 = vmatprep.subr.mxu0 0.0
    %544 = vmatpush1.msra.mxu0 0.0
    %545 = vmatprep.subr.mxu0 0.0
    %546 = vmatpush1.msra.mxu0 0.0
    %547 = vmatprep.subr.mxu0 0.0
    %548 = vmatpush1.msra.mxu0 0.0
    %549 = vmatprep.subr.mxu0 0.0
    %550 = vmatpush1.msra.mxu0 0.0
    %551 = vmatprep.subr.mxu0 0.0
    %552 = vmatpush1.msra.mxu0 0.0
    %553 = vmatprep.subr.mxu0 0.0
    %554 = vmatpush1.msra.mxu0 0.0
    %555 = vmatprep.subr.mxu0 0.0
    %556 = vmatpush1.msra.mxu0 0.0
    %557 = vmatprep.subr.mxu0 0.0
    %558 = vmatpush1.msra.mxu0 0.0
    %559 = vmatprep.subr.mxu0 0.0
    %560 = vmatpush1.msra.mxu0 0.0
    %561 = vmatprep.mubr.f32.mxu0 0.0
    %562 = vmatmul.mubr.f32.gmra.mrb[0].mxu0 %v492
    %v563 = vpop.f32.mrb[0].mxu0
    %v564 = vadd.f32 %v489, %v563
    %v565 = vpop.f32.mrb[0].mxu0
    %566 = vmatprep.mubr.f32.mxu0 0.0
    %567 = vmatmul.mubr.f32.gmra.mrb[0].mxu0 %v495
    %v568 = vpop.f32.mrb[0].mxu0
    %v569 = vadd.f32 %v489, %v568
    %v570 = vpop.f32.mrb[0].mxu0
    %571 = vdwg.mxu0
    %v572 = vxor.u32 %v564, 2147483648
    %v573 = vxor.u32 %v569, 2147483648
    %v574 = vmul.f32 %v572, 1.442695
    %v575 = vpow.pop %v574
    %v576 = vmul.f32 %v573, 1.442695
    %v577 = vpow.pop %v576
    %v578 = vadd.f32 %v575, 1.0
    %v579 = vadd.f32 %v577, 1.0
    %v580 = vrcp.pop %v578
    %v581 = vmul.f32 1.0, %v580
    %v582 = vrcp.pop %v579
    %v583 = vmul.f32 1.0, %v582
    %v584 = vmul.f32 %v581, %v91
    %v585 = vmul.f32 %v583, %v92
    %v586 = vadd.f32 %v93, %v564
    %v587 = vadd.f32 %v94, %v569
    %v588 = vmul.f32 %v586, 0.0625
    %v589 = vmul.f32 %v587, 0.0625
    %v590 = vmax.f32 %v588, 0.0
    %v591 = vmax.f32 %v589, 0.0
    %v592 = vmin.f32 %v590, 1.0
    %v593 = vmin.f32 %v591, 1.0
    %v594 = vsel %vm97, %v584, %v592
    %v595 = vsel %vm97, %v585, %v593
    %vm596 = vcmask 48128
    %597 = vst.msk [vmem:[%s12] sm:$0xff] %vm596, %v594
    %598 = vst.msk [vmem:[%s12 + $0x8] sm:$0xff] %vm596, %v595
    %s599 = scalar_lea.vmem %s0, 16
    %v600 = vld [vmem:[%s599] sm:$0xff]
    %v601 = vld [vmem:[%s599 + $0x8] sm:$0xff]
    %s602 = scalar_lea.vmem %s1, 16
    %v603 = vld [vmem:[%s602] sm:$0xff]
    %v604 = vld [vmem:[%s602 + $0x8] sm:$0xff]
    %s605 = scalar_lea.vmem %s2, 8
    %v606 = vld [vmem:[%s605] sm:$0xff]
    %s607 = scalar_lea.vmem %s3, 1
    %v608 = vld [vmem:[%s607] sm:$0x1]
    %v610 = vsel %vm110, %v600, 0
    %v613 = vsel %vm110, %v601, 0
    %615 = vmatprep.subr.mxu0 0.0
    %616 = vmatpush1.msra.mxu0 %v76
    %617 = vmatprep.subr.mxu0 0.0
    %618 = vmatpush1.msra.mxu0 %v77
    %619 = vmatprep.subr.mxu0 0.0
    %620 = vmatpush1.msra.mxu0 %v78
    %621 = vmatprep.subr.mxu0 0.0
    %622 = vmatpush1.msra.mxu0 %v79
    %623 = vmatprep.subr.mxu0 0.0
    %624 = vmatpush1.msra.mxu0 0.0
    %625 = vmatprep.subr.mxu0 0.0
    %626 = vmatpush1.msra.mxu0 0.0
    %627 = vmatprep.subr.mxu0 0.0
    %628 = vmatpush1.msra.mxu0 0.0
    %629 = vmatprep.subr.mxu0 0.0
    %630 = vmatpush1.msra.mxu0 0.0
    %631 = vmatprep.subr.mxu0 0.0
    %632 = vmatpush1.msra.mxu0 0.0
    %633 = vmatprep.subr.mxu0 0.0
    %634 = vmatpush1.msra.mxu0 0.0
    %635 = vmatprep.subr.mxu0 0.0
    %636 = vmatpush1.msra.mxu0 0.0
    %637 = vmatprep.subr.mxu0 0.0
    %638 = vmatpush1.msra.mxu0 0.0
    %639 = vmatprep.subr.mxu0 0.0
    %640 = vmatpush1.msra.mxu0 0.0
    %641 = vmatprep.subr.mxu0 0.0
    %642 = vmatpush1.msra.mxu0 0.0
    %643 = vmatprep.subr.mxu0 0.0
    %644 = vmatpush1.msra.mxu0 0.0
    %645 = vmatprep.subr.mxu0 0.0
    %646 = vmatpush1.msra.mxu0 0.0
    %647 = vmatprep.subr.mxu0 0.0
    %648 = vmatpush1.msra.mxu0 0.0
    %649 = vmatprep.subr.mxu0 0.0
    %650 = vmatpush1.msra.mxu0 0.0
    %651 = vmatprep.subr.mxu0 0.0
    %652 = vmatpush1.msra.mxu0 0.0
    %653 = vmatprep.subr.mxu0 0.0
    %654 = vmatpush1.msra.mxu0 0.0
    %655 = vmatprep.subr.mxu0 0.0
    %656 = vmatpush1.msra.mxu0 0.0
    %657 = vmatprep.subr.mxu0 0.0
    %658 = vmatpush1.msra.mxu0 0.0
    %659 = vmatprep.subr.mxu0 0.0
    %660 = vmatpush1.msra.mxu0 0.0
    %661 = vmatprep.subr.mxu0 0.0
    %662 = vmatpush1.msra.mxu0 0.0
    %663 = vmatprep.subr.mxu0 0.0
    %664 = vmatpush1.msra.mxu0 0.0
    %665 = vmatprep.subr.mxu0 0.0
    %666 = vmatpush1.msra.mxu0 0.0
    %667 = vmatprep.subr.mxu0 0.0
    %668 = vmatpush1.msra.mxu0 0.0
    %669 = vmatprep.subr.mxu0 0.0
    %670 = vmatpush1.msra.mxu0 0.0
    %671 = vmatprep.subr.mxu0 0.0
    %672 = vmatpush1.msra.mxu0 0.0
    %673 = vmatprep.subr.mxu0 0.0
    %674 = vmatpush1.msra.mxu0 0.0
    %675 = vmatprep.subr.mxu0 0.0
    %676 = vmatpush1.msra.mxu0 0.0
    %677 = vmatprep.subr.mxu0 0.0
    %678 = vmatpush1.msra.mxu0 0.0
    %679 = vmatprep.mubr.f32.mxu0 0.0
    %680 = vmatmul.mubr.f32.gmra.mrb[0].mxu0 %v610
    %v681 = vpop.f32.mrb[0].mxu0
    %v682 = vadd.f32 %v108, %v681
    %v683 = vpop.f32.mrb[0].mxu0
    %684 = vmatprep.mubr.f32.mxu0 0.0
    %685 = vmatmul.mubr.f32.gmra.mrb[0].mxu0 %v613
    %v686 = vpop.f32.mrb[0].mxu0
    %v687 = vadd.f32 %v108, %v686
    %v688 = vpop.f32.mrb[0].mxu0
    %689 = vdwg.mxu0
    %v690 = vtanh.pop %v682
    %v691 = vtanh.pop %v687
    %693 = vset.pattern.permute.xlu0 0
    %694 = vperm.xlu0 %693, %v603
    %v695 = vpop.permute.xlu0 %694
    %698 = vset.pattern.permute.xlu0 0
    %699 = vperm.xlu0 %698, %v604
    %v700 = vpop.permute.xlu0 %699
    %v702 = vmul.f32 %v690, %v695
    %v703 = vmul.f32 %v691, %v700
    %v705 = vsel %vm110, %v606, 0
    %707 = vmatprep.subr.mxu0 0.0
    %708 = vmatpush1.msra.mxu0 %v81
    %709 = vmatprep.subr.mxu0 0.0
    %710 = vmatpush1.msra.mxu0 %v82
    %711 = vmatprep.subr.mxu0 0.0
    %712 = vmatpush1.msra.mxu0 %v83
    %713 = vmatprep.subr.mxu0 0.0
    %714 = vmatpush1.msra.mxu0 %v84
    %715 = vmatprep.subr.mxu0 0.0
    %716 = vmatpush1.msra.mxu0 0.0
    %717 = vmatprep.subr.mxu0 0.0
    %718 = vmatpush1.msra.mxu0 0.0
    %719 = vmatprep.subr.mxu0 0.0
    %720 = vmatpush1.msra.mxu0 0.0
    %721 = vmatprep.subr.mxu0 0.0
    %722 = vmatpush1.msra.mxu0 0.0
    %723 = vmatprep.subr.mxu0 0.0
    %724 = vmatpush1.msra.mxu0 0.0
    %725 = vmatprep.subr.mxu0 0.0
    %726 = vmatpush1.msra.mxu0 0.0
    %727 = vmatprep.subr.mxu0 0.0
    %728 = vmatpush1.msra.mxu0 0.0
    %729 = vmatprep.subr.mxu0 0.0
    %730 = vmatpush1.msra.mxu0 0.0
    %731 = vmatprep.subr.mxu0 0.0
    %732 = vmatpush1.msra.mxu0 0.0
    %733 = vmatprep.subr.mxu0 0.0
    %734 = vmatpush1.msra.mxu0 0.0
    %735 = vmatprep.subr.mxu0 0.0
    %736 = vmatpush1.msra.mxu0 0.0
    %737 = vmatprep.subr.mxu0 0.0
    %738 = vmatpush1.msra.mxu0 0.0
    %739 = vmatprep.subr.mxu0 0.0
    %740 = vmatpush1.msra.mxu0 0.0
    %741 = vmatprep.subr.mxu0 0.0
    %742 = vmatpush1.msra.mxu0 0.0
    %743 = vmatprep.subr.mxu0 0.0
    %744 = vmatpush1.msra.mxu0 0.0
    %745 = vmatprep.subr.mxu0 0.0
    %746 = vmatpush1.msra.mxu0 0.0
    %747 = vmatprep.subr.mxu0 0.0
    %748 = vmatpush1.msra.mxu0 0.0
    %749 = vmatprep.subr.mxu0 0.0
    %750 = vmatpush1.msra.mxu0 0.0
    %751 = vmatprep.subr.mxu0 0.0
    %752 = vmatpush1.msra.mxu0 0.0
    %753 = vmatprep.subr.mxu0 0.0
    %754 = vmatpush1.msra.mxu0 0.0
    %755 = vmatprep.subr.mxu0 0.0
    %756 = vmatpush1.msra.mxu0 0.0
    %757 = vmatprep.subr.mxu0 0.0
    %758 = vmatpush1.msra.mxu0 0.0
    %759 = vmatprep.subr.mxu0 0.0
    %760 = vmatpush1.msra.mxu0 0.0
    %761 = vmatprep.subr.mxu0 0.0
    %762 = vmatpush1.msra.mxu0 0.0
    %763 = vmatprep.subr.mxu0 0.0
    %764 = vmatpush1.msra.mxu0 0.0
    %765 = vmatprep.subr.mxu0 0.0
    %766 = vmatpush1.msra.mxu0 0.0
    %767 = vmatprep.subr.mxu0 0.0
    %768 = vmatpush1.msra.mxu0 0.0
    %769 = vmatprep.subr.mxu0 0.0
    %770 = vmatpush1.msra.mxu0 0.0
    %771 = vmatprep.mubr.f32.mxu0 0.0
    %772 = vmatmul.mubr.f32.gmra.mrb[0].mxu0 %v705
    %v773 = vpop.f32.mrb[0].mxu0
    %v774 = vadd.f32 %v210, %v773
    %v775 = vpop.f32.mrb[0].mxu0
    %776 = vdwg.mxu0
    %v777 = vtanh.pop %v774
    %v779 = vsel %vm110, %v702, 0
    %v782 = vsel %vm110, %v703, 0
    %v785 = vsel %vm110, %v777, 0
    %787 = vmatprep.subr.mxu0 0.0
    %788 = vmatpush1.xpose.msra.mxu0 %v785
    %789 = vmatprep.subr.mxu0 0.0
    %790 = vmatpush1.xpose.msra.mxu0 0.0
    %791 = vmatprep.subr.mxu0 0.0
    %792 = vmatpush1.xpose.msra.mxu0 0.0
    %793 = vmatprep.subr.mxu0 0.0
    %794 = vmatpush1.xpose.msra.mxu0 0.0
    %795 = vmatprep.subr.mxu0 0.0
    %796 = vmatpush1.xpose.msra.mxu0 0.0
    %797 = vmatprep.subr.mxu0 0.0
    %798 = vmatpush1.xpose.msra.mxu0 0.0
    %799 = vmatprep.subr.mxu0 0.0
    %800 = vmatpush1.xpose.msra.mxu0 0.0
    %801 = vmatprep.subr.mxu0 0.0
    %802 = vmatpush1.xpose.msra.mxu0 0.0
    %803 = vmatprep.subr.mxu0 0.0
    %804 = vmatpush1.xpose.msra.mxu0 0.0
    %805 = vmatprep.subr.mxu0 0.0
    %806 = vmatpush1.xpose.msra.mxu0 0.0
    %807 = vmatprep.subr.mxu0 0.0
    %808 = vmatpush1.xpose.msra.mxu0 0.0
    %809 = vmatprep.subr.mxu0 0.0
    %810 = vmatpush1.xpose.msra.mxu0 0.0
    %811 = vmatprep.subr.mxu0 0.0
    %812 = vmatpush1.xpose.msra.mxu0 0.0
    %813 = vmatprep.subr.mxu0 0.0
    %814 = vmatpush1.xpose.msra.mxu0 0.0
    %815 = vmatprep.subr.mxu0 0.0
    %816 = vmatpush1.xpose.msra.mxu0 0.0
    %817 = vmatprep.subr.mxu0 0.0
    %818 = vmatpush1.xpose.msra.mxu0 0.0
    %819 = vmatprep.subr.mxu0 0.0
    %820 = vmatpush1.xpose.msra.mxu0 0.0
    %821 = vmatprep.subr.mxu0 0.0
    %822 = vmatpush1.xpose.msra.mxu0 0.0
    %823 = vmatprep.subr.mxu0 0.0
    %824 = vmatpush1.xpose.msra.mxu0 0.0
    %825 = vmatprep.subr.mxu0 0.0
    %826 = vmatpush1.xpose.msra.mxu0 0.0
    %827 = vmatprep.subr.mxu0 0.0
    %828 = vmatpush1.xpose.msra.mxu0 0.0
    %829 = vmatprep.subr.mxu0 0.0
    %830 = vmatpush1.xpose.msra.mxu0 0.0
    %831 = vmatprep.subr.mxu0 0.0
    %832 = vmatpush1.xpose.msra.mxu0 0.0
    %833 = vmatprep.subr.mxu0 0.0
    %834 = vmatpush1.xpose.msra.mxu0 0.0
    %835 = vmatprep.subr.mxu0 0.0
    %836 = vmatpush1.xpose.msra.mxu0 0.0
    %837 = vmatprep.subr.mxu0 0.0
    %838 = vmatpush1.xpose.msra.mxu0 0.0
    %839 = vmatprep.subr.mxu0 0.0
    %840 = vmatpush1.xpose.msra.mxu0 0.0
    %841 = vmatprep.subr.mxu0 0.0
    %842 = vmatpush1.xpose.msra.mxu0 0.0
    %843 = vmatprep.subr.mxu0 0.0
    %844 = vmatpush1.xpose.msra.mxu0 0.0
    %845 = vmatprep.subr.mxu0 0.0
    %846 = vmatpush1.xpose.msra.mxu0 0.0
    %847 = vmatprep.subr.mxu0 0.0
    %848 = vmatpush1.xpose.msra.mxu0 0.0
    %849 = vmatprep.subr.mxu0 0.0
    %850 = vmatpush1.xpose.msra.mxu0 0.0
    %851 = vmatprep.mubr.f32.mxu0 0.0
    %852 = vmatmul.mubr.f32.gmra.mrb[0].mxu0 %v779
    %v853 = vpop.f32.mrb[0].mxu0
    %v854 = vadd.f32 0.0, %v853
    %v855 = vpop.f32.mrb[0].mxu0
    %856 = vmatprep.mubr.f32.mxu0 0.0
    %857 = vmatmul.mubr.f32.gmra.mrb[0].mxu0 %v782
    %v858 = vpop.f32.mrb[0].mxu0
    %v859 = vadd.f32 0.0, %v858
    %v860 = vpop.f32.mrb[0].mxu0
    %861 = vdwg.mxu0
    %vm862 = vcmp.gt.f32.partialorder %v608, 0.0
    %v863 = vsel %vm862, 1, 0
    %v864 = vlaneseq
    %v865 = vshrl.u32 %v864, 7
    %v866 = vsub.s32 0, %v865
    %v867 = vrot.slane %v863, %v866
    %vm868 = vcmp.eq.s32.totalorder %v867, 1
    %v869 = vsel %vm868, %v854, -1e+09
    %v870 = vsel %vm868, %v859, -1e+09
    %v871 = vsel %vm379, %v869, -inf
    %872 = vmax.xlane.f32.xlu0 %v871
    %v873 = vpop.xlane.xlu0 %872
    %v874 = vsel %vm379, %v870, -inf
    %875 = vmax.xlane.f32.xlu0 %v874
    %v876 = vpop.xlane.xlu0 %875
    %v877 = vsub.f32 %v869, %v873
    %v878 = vsub.f32 %v870, %v876
    %v879 = vmul.f32 %v877, 1.442695
    %v880 = vpow.pop %v879
    %v881 = vmul.f32 %v878, 1.442695
    %v882 = vpow.pop %v881
    %v883 = vsel %vm379, %v880, 0.0
    %884 = vadd.xlane.f32.xlu0 %v883
    %v885 = vpop.xlane.xlu0 %884
    %v886 = vsel %vm379, %v882, 0.0
    %887 = vadd.xlane.f32.xlu0 %v886
    %v888 = vpop.xlane.xlu0 %887
    %v889 = vrcp.pop %v885
    %v890 = vrcp.pop %v888
    %v891 = vmul.f32 %v880, %v889
    %v892 = vmul.f32 %v882, %v890
    %v894 = vsel %vm379, %v891, 0
    %v897 = vsel %vm379, %v892, 0
    %899 = vmatprep.subr.mxu0 0.0
    %900 = vmatpush1.msra.mxu0 %v777
    %901 = vmatprep.subr.mxu0 0.0
    %902 = vmatpush1.msra.mxu0 0.0
    %903 = vmatprep.subr.mxu0 0.0
    %904 = vmatpush1.msra.mxu0 0.0
    %905 = vmatprep.subr.mxu0 0.0
    %906 = vmatpush1.msra.mxu0 0.0
    %907 = vmatprep.subr.mxu0 0.0
    %908 = vmatpush1.msra.mxu0 0.0
    %909 = vmatprep.subr.mxu0 0.0
    %910 = vmatpush1.msra.mxu0 0.0
    %911 = vmatprep.subr.mxu0 0.0
    %912 = vmatpush1.msra.mxu0 0.0
    %913 = vmatprep.subr.mxu0 0.0
    %914 = vmatpush1.msra.mxu0 0.0
    %915 = vmatprep.subr.mxu0 0.0
    %916 = vmatpush1.msra.mxu0 0.0
    %917 = vmatprep.subr.mxu0 0.0
    %918 = vmatpush1.msra.mxu0 0.0
    %919 = vmatprep.subr.mxu0 0.0
    %920 = vmatpush1.msra.mxu0 0.0
    %921 = vmatprep.subr.mxu0 0.0
    %922 = vmatpush1.msra.mxu0 0.0
    %923 = vmatprep.subr.mxu0 0.0
    %924 = vmatpush1.msra.mxu0 0.0
    %925 = vmatprep.subr.mxu0 0.0
    %926 = vmatpush1.msra.mxu0 0.0
    %927 = vmatprep.subr.mxu0 0.0
    %928 = vmatpush1.msra.mxu0 0.0
    %929 = vmatprep.subr.mxu0 0.0
    %930 = vmatpush1.msra.mxu0 0.0
    %931 = vmatprep.subr.mxu0 0.0
    %932 = vmatpush1.msra.mxu0 0.0
    %933 = vmatprep.subr.mxu0 0.0
    %934 = vmatpush1.msra.mxu0 0.0
    %935 = vmatprep.subr.mxu0 0.0
    %936 = vmatpush1.msra.mxu0 0.0
    %937 = vmatprep.subr.mxu0 0.0
    %938 = vmatpush1.msra.mxu0 0.0
    %939 = vmatprep.subr.mxu0 0.0
    %940 = vmatpush1.msra.mxu0 0.0
    %941 = vmatprep.subr.mxu0 0.0
    %942 = vmatpush1.msra.mxu0 0.0
    %943 = vmatprep.subr.mxu0 0.0
    %944 = vmatpush1.msra.mxu0 0.0
    %945 = vmatprep.subr.mxu0 0.0
    %946 = vmatpush1.msra.mxu0 0.0
    %947 = vmatprep.subr.mxu0 0.0
    %948 = vmatpush1.msra.mxu0 0.0
    %949 = vmatprep.subr.mxu0 0.0
    %950 = vmatpush1.msra.mxu0 0.0
    %951 = vmatprep.subr.mxu0 0.0
    %952 = vmatpush1.msra.mxu0 0.0
    %953 = vmatprep.subr.mxu0 0.0
    %954 = vmatpush1.msra.mxu0 0.0
    %955 = vmatprep.subr.mxu0 0.0
    %956 = vmatpush1.msra.mxu0 0.0
    %957 = vmatprep.subr.mxu0 0.0
    %958 = vmatpush1.msra.mxu0 0.0
    %959 = vmatprep.subr.mxu0 0.0
    %960 = vmatpush1.msra.mxu0 0.0
    %961 = vmatprep.subr.mxu0 0.0
    %962 = vmatpush1.msra.mxu0 0.0
    %963 = vmatprep.mubr.f32.mxu0 0.0
    %964 = vmatmul.mubr.f32.gmra.mrb[0].mxu0 %v894
    %v965 = vpop.f32.mrb[0].mxu0
    %v966 = vadd.f32 0.0, %v965
    %v967 = vpop.f32.mrb[0].mxu0
    %968 = vmatprep.mubr.f32.mxu0 0.0
    %969 = vmatmul.mubr.f32.gmra.mrb[0].mxu0 %v897
    %v970 = vpop.f32.mrb[0].mxu0
    %v971 = vadd.f32 0.0, %v970
    %v972 = vpop.f32.mrb[0].mxu0
    %973 = vdwg.mxu0
    %v974 = vadd.f32 %v702, %v966
    %v975 = vadd.f32 %v703, %v971
    %v977 = vsel %vm110, %v974, 0
    %v980 = vsel %vm110, %v975, 0
    %982 = vmatprep.subr.mxu0 0.0
    %983 = vmatpush1.msra.mxu0 %v86
    %984 = vmatprep.subr.mxu0 0.0
    %985 = vmatpush1.msra.mxu0 %v87
    %986 = vmatprep.subr.mxu0 0.0
    %987 = vmatpush1.msra.mxu0 %v88
    %988 = vmatprep.subr.mxu0 0.0
    %989 = vmatpush1.msra.mxu0 %v89
    %990 = vmatprep.subr.mxu0 0.0
    %991 = vmatpush1.msra.mxu0 0.0
    %992 = vmatprep.subr.mxu0 0.0
    %993 = vmatpush1.msra.mxu0 0.0
    %994 = vmatprep.subr.mxu0 0.0
    %995 = vmatpush1.msra.mxu0 0.0
    %996 = vmatprep.subr.mxu0 0.0
    %997 = vmatpush1.msra.mxu0 0.0
    %998 = vmatprep.subr.mxu0 0.0
    %999 = vmatpush1.msra.mxu0 0.0
    %1000 = vmatprep.subr.mxu0 0.0
    %1001 = vmatpush1.msra.mxu0 0.0
    %1002 = vmatprep.subr.mxu0 0.0
    %1003 = vmatpush1.msra.mxu0 0.0
    %1004 = vmatprep.subr.mxu0 0.0
    %1005 = vmatpush1.msra.mxu0 0.0
    %1006 = vmatprep.subr.mxu0 0.0
    %1007 = vmatpush1.msra.mxu0 0.0
    %1008 = vmatprep.subr.mxu0 0.0
    %1009 = vmatpush1.msra.mxu0 0.0
    %1010 = vmatprep.subr.mxu0 0.0
    %1011 = vmatpush1.msra.mxu0 0.0
    %1012 = vmatprep.subr.mxu0 0.0
    %1013 = vmatpush1.msra.mxu0 0.0
    %1014 = vmatprep.subr.mxu0 0.0
    %1015 = vmatpush1.msra.mxu0 0.0
    %1016 = vmatprep.subr.mxu0 0.0
    %1017 = vmatpush1.msra.mxu0 0.0
    %1018 = vmatprep.subr.mxu0 0.0
    %1019 = vmatpush1.msra.mxu0 0.0
    %1020 = vmatprep.subr.mxu0 0.0
    %1021 = vmatpush1.msra.mxu0 0.0
    %1022 = vmatprep.subr.mxu0 0.0
    %1023 = vmatpush1.msra.mxu0 0.0
    %1024 = vmatprep.subr.mxu0 0.0
    %1025 = vmatpush1.msra.mxu0 0.0
    %1026 = vmatprep.subr.mxu0 0.0
    %1027 = vmatpush1.msra.mxu0 0.0
    %1028 = vmatprep.subr.mxu0 0.0
    %1029 = vmatpush1.msra.mxu0 0.0
    %1030 = vmatprep.subr.mxu0 0.0
    %1031 = vmatpush1.msra.mxu0 0.0
    %1032 = vmatprep.subr.mxu0 0.0
    %1033 = vmatpush1.msra.mxu0 0.0
    %1034 = vmatprep.subr.mxu0 0.0
    %1035 = vmatpush1.msra.mxu0 0.0
    %1036 = vmatprep.subr.mxu0 0.0
    %1037 = vmatpush1.msra.mxu0 0.0
    %1038 = vmatprep.subr.mxu0 0.0
    %1039 = vmatpush1.msra.mxu0 0.0
    %1040 = vmatprep.subr.mxu0 0.0
    %1041 = vmatpush1.msra.mxu0 0.0
    %1042 = vmatprep.subr.mxu0 0.0
    %1043 = vmatpush1.msra.mxu0 0.0
    %1044 = vmatprep.subr.mxu0 0.0
    %1045 = vmatpush1.msra.mxu0 0.0
    %1046 = vmatprep.mubr.f32.mxu0 0.0
    %1047 = vmatmul.mubr.f32.gmra.mrb[0].mxu0 %v977
    %v1048 = vpop.f32.mrb[0].mxu0
    %v1049 = vadd.f32 %v489, %v1048
    %v1050 = vpop.f32.mrb[0].mxu0
    %1051 = vmatprep.mubr.f32.mxu0 0.0
    %1052 = vmatmul.mubr.f32.gmra.mrb[0].mxu0 %v980
    %v1053 = vpop.f32.mrb[0].mxu0
    %v1054 = vadd.f32 %v489, %v1053
    %v1055 = vpop.f32.mrb[0].mxu0
    %1056 = vdwg.mxu0
    %v1057 = vxor.u32 %v1049, 2147483648
    %v1058 = vxor.u32 %v1054, 2147483648
    %v1059 = vmul.f32 %v1057, 1.442695
    %v1060 = vpow.pop %v1059
    %v1061 = vmul.f32 %v1058, 1.442695
    %v1062 = vpow.pop %v1061
    %v1063 = vadd.f32 %v1060, 1.0
    %v1064 = vadd.f32 %v1062, 1.0
    %v1065 = vrcp.pop %v1063
    %v1066 = vmul.f32 1.0, %v1065
    %v1067 = vrcp.pop %v1064
    %v1068 = vmul.f32 1.0, %v1067
    %v1069 = vmul.f32 %v1066, %v91
    %v1070 = vmul.f32 %v1068, %v92
    %v1071 = vadd.f32 %v93, %v1049
    %v1072 = vadd.f32 %v94, %v1054
    %v1073 = vmul.f32 %v1071, 0.0625
    %v1074 = vmul.f32 %v1072, 0.0625
    %v1075 = vmax.f32 %v1073, 0.0
    %v1076 = vmax.f32 %v1074, 0.0
    %v1077 = vmin.f32 %v1075, 1.0
    %v1078 = vmin.f32 %v1076, 1.0
    %v1079 = vsel %vm97, %v1069, %v1077
    %v1080 = vsel %vm97, %v1070, %v1078
    %s1081 = scalar_lea.vmem %s12, 16
    %1082 = vst.msk [vmem:[%s1081] sm:$0xff] %vm596, %v1079
    %1083 = vst.msk [vmem:[%s1081 + $0x8] sm:$0xff] %vm596, %v1080
    // Predicated region
    $region62: #{csmgan_forward.1} parent=1 // pred_check
      _
    $region63: #{csmgan_forward.1} parent=1 // pred_check_branch
      %1085 = sbr.rel (0) target = $region65
    $region64: #{csmgan_forward.1} parent=1 // pred_region
      _
    $region65: #{csmgan_forward.1} parent=1 // pred_fallthru
      _
    // Predicated region
    $region66: #{csmgan_forward.1} parent=1 // pred_check
      _
    $region67: #{csmgan_forward.1} parent=1 // pred_check_branch
      %1087 = sbr.rel (0) target = $region69
    $region68: #{csmgan_forward.1} parent=1 // pred_region
      _
    $region69: #{csmgan_forward.1} parent=1 // pred_fallthru
      _
    %1088 = vsyncpa [#allocation3], 1
    %1089 = vsyncpa [#allocation5], 1

</llo_original>
